<compile_context>
chip_gen: v7x
topology: tpu7x:2x2x1
jax: 0.10.0
libtpu: 0.0.40
codegen_flags: <defaults>
</compile_context>

<pallas_src>
import functools
import math

import jax
import jax.numpy as jnp
from jax import lax
from jax.experimental import pallas as pl
from jax.experimental.pallas import tpu as pltpu

LAYER_NORM_EPS = 1e-12


def _default_vmem_limit():
    try:
        cap = int(pltpu.get_tpu_info().vmem_capacity_bytes)
    except Exception:
        cap = 64 * 1024 * 1024  # conservative fallback (v7x physical size)
    # leave headroom below physical; 48 MiB on v7x, ~96 MiB on v5e/v6e capped
    return min(cap * 3 // 4, 100 * 1024 * 1024)


_VMEM_LIMIT = _default_vmem_limit()


def _compiler_params(dimension_semantics):
    return pltpu.CompilerParams(
        dimension_semantics=dimension_semantics,
        vmem_limit_bytes=_VMEM_LIMIT,
    )


def _pick_tile(dim, target, step):
    """Largest multiple of `step` that divides `dim` and is <= `target`.
    Falls back to the full dim (always a legal BlockSpec block size)."""
    if dim <= target:
        return dim
    best = dim
    t = step
    while t <= target:
        if dim % t == 0:
            best = t
        t += step
    return best


def _gelu_erf(x):
    # BERT's exact (erf-based) GELU.
    return 0.5 * x * (1.0 + lax.erf(x * 0.7071067811865476))


# ---------------------------------------------------------------------------
# Weight-resident linear (+ bias, optional GELU).
# Grid (N-tiles, M-tiles); full K per step, weight block constant over M.
# ---------------------------------------------------------------------------
def _linear_kernel(x_ref, w_ref, b_ref, o_ref, *, activation):
    y = jnp.dot(x_ref[...], w_ref[...], preferred_element_type=jnp.float32)
    y = y + b_ref[...].astype(jnp.float32)
    if activation == "gelu":
        y = _gelu_erf(y)
    o_ref[...] = y.astype(o_ref.dtype)


def linear(x, w, b, *, activation=None, out_dtype=jnp.bfloat16, tm=512,
           max_weight_block_bytes=16 * 1024 * 1024):
    M, K = x.shape
    _, N = w.shape
    tm = _pick_tile(M, tm, 16)                       # bf16 sublane packing
    # Weight-resident: keep full K.  Only tile N if a (K, tn) weight block
    # would be too large for comfortable double buffering (never at BERT size).
    bytes_per_col = K * jnp.dtype(w.dtype).itemsize
    tn_target = max(128, (max_weight_block_bytes // bytes_per_col) // 128 * 128)
    tn = _pick_tile(N, tn_target, 128)
    grid = (N // tn, M // tm)                        # N outer -> weight block
    return pl.pallas_call(                           # re-DMA'd only N//tn times
        functools.partial(_linear_kernel, activation=activation),
        grid=grid,
        in_specs=[
            pl.BlockSpec((tm, K), lambda j, i: (i, 0)),
            pl.BlockSpec((K, tn), lambda j, i: (0, j)),   # constant over M axis
            pl.BlockSpec((1, tn), lambda j, i: (0, j)),
        ],
        out_specs=pl.BlockSpec((tm, tn), lambda j, i: (i, j)),
        out_shape=jax.ShapeDtypeStruct((M, N), out_dtype),
        compiler_params=_compiler_params(("parallel", "parallel")),
    )(x, w, b)


# ---------------------------------------------------------------------------
# Weight-resident linear + bias + residual + LayerNorm (full K, full N).
# ---------------------------------------------------------------------------
def _linear_residual_ln_kernel(x_ref, w_ref, b_ref, res_ref, g_ref, bt_ref,
                               o_ref):
    y = jnp.dot(x_ref[...], w_ref[...], preferred_element_type=jnp.float32)
    y = y + b_ref[...].astype(jnp.float32) + res_ref[...].astype(jnp.float32)
    mean = jnp.mean(y, axis=-1, keepdims=True)
    cent = y - mean
    var = jnp.mean(cent * cent, axis=-1, keepdims=True)
    inv = lax.rsqrt(var + LAYER_NORM_EPS)
    o_ref[...] = (cent * inv * g_ref[...].astype(jnp.float32)
                  + bt_ref[...].astype(jnp.float32)).astype(o_ref.dtype)


def linear_residual_ln(x, w, b, residual, gamma, beta, *,
                       out_dtype=jnp.bfloat16, tm=512):
    M, K = x.shape
    _, N = w.shape
    tm = _pick_tile(M, tm, 16)
    grid = (M // tm,)
    return pl.pallas_call(
        _linear_residual_ln_kernel,
        grid=grid,
        in_specs=[
            pl.BlockSpec((tm, K), lambda i: (i, 0)),
            pl.BlockSpec((K, N), lambda i: (0, 0)),    # weight DMA'd once
            pl.BlockSpec((1, N), lambda i: (0, 0)),
            pl.BlockSpec((tm, N), lambda i: (i, 0)),
            pl.BlockSpec((1, N), lambda i: (0, 0)),
            pl.BlockSpec((1, N), lambda i: (0, 0)),
        ],
        out_specs=pl.BlockSpec((tm, N), lambda i: (i, 0)),
        out_shape=jax.ShapeDtypeStruct((M, N), out_dtype),
        compiler_params=_compiler_params(("parallel",)),
    )(x, w, b, residual, gamma, beta)


# ---------------------------------------------------------------------------
# Flash-style attention (online softmax over kv tiles), no probs output.
# Heads are static lane sub-ranges of the (S, H) layout; accumulator is a
# single (tq, H) lane slab -> one dense store at the end.
# ---------------------------------------------------------------------------
def _flash_attn_kernel(q_ref, k_ref, v_ref, mask_ref, hm_ref, o_ref,
                       m_sc, l_sc, acc_sc, *, num_heads, head_dim, scale):
    kv = pl.program_id(2)

    @pl.when(kv == 0)
    def _():
        # -1e30 (not -inf) avoids exp(-inf - -inf) = nan; safe with the
        # -10000 additive mask BERT uses.
        m_sc[...] = jnp.full(m_sc.shape, -1e30, jnp.float32)
        l_sc[...] = jnp.zeros_like(l_sc)
        acc_sc[...] = jnp.zeros_like(acc_sc)

    mask = mask_ref[0].astype(jnp.float32)            # (1, tkv) additive
    q = q_ref[0] * scale                              # scale folded into Q
    k = k_ref[0]
    v = v_ref[0]
    for h in range(num_heads):
        sl = slice(h * head_dim, (h + 1) * head_dim)
        s = lax.dot_general(q[:, sl], k[:, sl], (((1,), (1,)), ((), ())),
                            preferred_element_type=jnp.float32)
        s = s + mask
        m_prev = m_sc[h]                              # (tq, 1)
        m_new = jnp.maximum(m_prev, jnp.max(s, axis=-1, keepdims=True))
        alpha = jnp.exp(m_prev - m_new)
        p = jnp.exp(s - m_new)
        l_sc[h] = alpha * l_sc[h] + jnp.sum(p, axis=-1, keepdims=True)
        acc_sc[:, sl] = alpha * acc_sc[:, sl] + jnp.dot(
            p.astype(v.dtype), v[:, sl], preferred_element_type=jnp.float32)
        m_sc[h] = m_new

    @pl.when(kv == pl.num_programs(2) - 1)
    def _():
        for h in range(num_heads):
            sl = slice(h * head_dim, (h + 1) * head_dim)
            inv_l = pl.reciprocal(l_sc[h], approx=True)
            acc_sc[:, sl] = acc_sc[:, sl] * (inv_l * hm_ref[0, h])
        o_ref[0] = acc_sc[...].astype(o_ref.dtype)    # single lane-dense store


def flash_attention(qkv, attention_mask, head_mask, *, num_heads,
                    tq=512, tkv=512):
    B, S, H3 = qkv.shape
    H = H3 // 3
    head_dim = H // num_heads
    tq = _pick_tile(S, tq, 16)
    tkv = _pick_tile(S, tkv, 128)
    grid = (B, S // tq, S // tkv)
    kernel = functools.partial(
        _flash_attn_kernel, num_heads=num_heads, head_dim=head_dim,
        scale=1.0 / math.sqrt(head_dim))
    return pl.pallas_call(
        kernel,
        grid=grid,
        in_specs=[
            pl.BlockSpec((1, tq, H), lambda b, qi, kv: (b, qi, 0)),   # Q chunk
            pl.BlockSpec((1, tkv, H), lambda b, qi, kv: (b, kv, 1)),  # K chunk
            pl.BlockSpec((1, tkv, H), lambda b, qi, kv: (b, kv, 2)),  # V chunk
            pl.BlockSpec((1, 1, tkv), lambda b, qi, kv: (b, 0, kv)),  # mask
            pl.BlockSpec(memory_space=pltpu.MemorySpace.SMEM),        # head mask
        ],
        out_specs=pl.BlockSpec((1, tq, H), lambda b, qi, kv: (b, qi, 0)),
        out_shape=jax.ShapeDtypeStruct((B, S, H), jnp.bfloat16),
        scratch_shapes=[
            pltpu.VMEM((num_heads, tq, 1), jnp.float32),   # running max
            pltpu.VMEM((num_heads, tq, 1), jnp.float32),   # running sum
            pltpu.VMEM((tq, H), jnp.float32),              # lane-slab accum
        ],
        compiler_params=_compiler_params(("parallel", "parallel", "arbitrary")),
    )(qkv, qkv, qkv, attention_mask, head_mask)


# ---------------------------------------------------------------------------
# Attention that also materializes normalized probs (per (batch, head, q-tile)
# grid step), used only when the module's output_attentions flag is set.
# Per-head K/V blocks + bf16 probs keep VMEM bounded on v7x at long S.
# ---------------------------------------------------------------------------
def _attn_probs_kernel(q_ref, k_ref, v_ref, mask_ref, hm_ref, o_ref, p_ref,
                       *, scale):
    h = pl.program_id(1)
    q = q_ref[0, 0] * scale                           # (tq, DH) bf16
    k = k_ref[0, 0]                                   # (S,  DH) bf16
    v = v_ref[0, 0]                                   # (S,  DH) bf16
    s = lax.dot_general(q, k, (((1,), (1,)), ((), ())),
                        preferred_element_type=jnp.float32)
    s = s + mask_ref[0].astype(jnp.float32)           # (1, S) additive mask
    s = s - jnp.max(s, axis=-1, keepdims=True)
    e = jnp.exp(s)
    p = e / jnp.sum(e, axis=-1, keepdims=True)        # exact divide (user-visible)
    p = p * hm_ref[0, h]                              # per-head mask (HF order)
    p_ref[0, 0] = p.astype(p_ref.dtype)
    o_ref[0, 0] = jnp.dot(p.astype(v.dtype), v,
                          preferred_element_type=jnp.float32).astype(o_ref.dtype)


def attention_with_probs(qkv, attention_mask, head_mask, *, num_heads,
                         tq=512, probs_dtype=jnp.bfloat16):
    B, S, H3 = qkv.shape
    H = H3 // 3
    head_dim = H // num_heads
    tq = _pick_tile(S, tq, 16)
    # Wrapper-side layout plumbing: per-head (B, NH, S, DH) views of Q/K/V.
    qkv5 = qkv.reshape(B, S, 3, num_heads, head_dim)
    q = jnp.transpose(qkv5[:, :, 0], (0, 2, 1, 3))
    k = jnp.transpose(qkv5[:, :, 1], (0, 2, 1, 3))
    v = jnp.transpose(qkv5[:, :, 2], (0, 2, 1, 3))
    grid = (B, num_heads, S // tq)
    kernel = functools.partial(_attn_probs_kernel,
                               scale=1.0 / math.sqrt(head_dim))
    ctx_h, probs = pl.pallas_call(
        kernel,
        grid=grid,
        in_specs=[
            pl.BlockSpec((1, 1, tq, head_dim), lambda b, h, qi: (b, h, qi, 0)),
            pl.BlockSpec((1, 1, S, head_dim), lambda b, h, qi: (b, h, 0, 0)),
            pl.BlockSpec((1, 1, S, head_dim), lambda b, h, qi: (b, h, 0, 0)),
            pl.BlockSpec((1, 1, S), lambda b, h, qi: (b, 0, 0)),
            pl.BlockSpec(memory_space=pltpu.MemorySpace.SMEM),        # head mask
        ],
        out_specs=(
            pl.BlockSpec((1, 1, tq, head_dim), lambda b, h, qi: (b, h, qi, 0)),
            pl.BlockSpec((1, 1, tq, S), lambda b, h, qi: (b, h, qi, 0)),
        ),
        out_shape=(
            jax.ShapeDtypeStruct((B, num_heads, S, head_dim), jnp.bfloat16),
            jax.ShapeDtypeStruct((B, num_heads, S, S), probs_dtype),
        ),
        compiler_params=_compiler_params(("parallel", "parallel", "parallel")),
    )(q, k, v, attention_mask, head_mask)
    ctx = jnp.transpose(ctx_h, (0, 2, 1, 3)).reshape(B, S, H)
    return ctx, probs


# ---------------------------------------------------------------------------
# One BertLayer and the encoder stack.
# ---------------------------------------------------------------------------
def bert_layer(hidden_states, attention_mask, head_mask, params, *,
               num_heads, output_attentions):
    B, S, H = hidden_states.shape
    M = B * S
    # One upstream cast: the residual stream and all matmul inputs travel bf16.
    x2d = hidden_states.astype(jnp.bfloat16).reshape(M, H)

    # fused QKV projection (weight-resident bf16 GEMM, f32 accumulation)
    qkv = linear(x2d, params['wqkv'], params['bqkv'],
                 out_dtype=jnp.bfloat16).reshape(B, S, 3 * H)

    if output_attentions:
        ctx, probs = attention_with_probs(
            qkv, attention_mask, head_mask, num_heads=num_heads)
    else:
        ctx = flash_attention(qkv, attention_mask, head_mask,
                              num_heads=num_heads)
        probs = None
    ctx2d = ctx.reshape(M, H)

    # attention output projection + residual + LayerNorm (fused)
    h1 = linear_residual_ln(ctx2d, params['wo'], params['bo'], x2d,
                            params['ln1g'], params['ln1b'],
                            out_dtype=jnp.bfloat16)

    # feed-forward: GELU intermediate, then output projection + residual + LN
    inter = linear(h1, params['wi'], params['bi'], activation="gelu",
                   out_dtype=jnp.bfloat16)
    out2d = linear_residual_ln(inter, params['wo2'], params['bo2'], h1,
                               params['ln2g'], params['ln2b'],
                               out_dtype=jnp.bfloat16)
    return out2d.reshape(B, S, H), probs


def large_encoder_forward(hidden_states, attention_mask, head_mask,
                          layer_params, *, num_heads,
                          output_hidden_states=True, output_attentions=True):
    """Mirrors LargeEncoder.forward (the GPU split is a no-op on TPU)."""
    all_hidden_states = ()
    all_attentions = ()
    for i, params in enumerate(layer_params):
        if output_hidden_states:
            all_hidden_states = all_hidden_states + (hidden_states,)
        hidden_states, attn = bert_layer(
            hidden_states, attention_mask, head_mask[i], params,
            num_heads=num_heads, output_attentions=output_attentions)
        if output_attentions:
            all_attentions = all_attentions + (attn,)
    if output_hidden_states:
        all_hidden_states = all_hidden_states + (hidden_states,)
    outputs = (hidden_states,)
    if output_hidden_states:
        outputs = outputs + (all_hidden_states,)
    if output_attentions:
        outputs = outputs + (all_attentions,)
    return outputs


def init_layer_params(key, hidden, intermediate):
    ks = jax.random.split(key, 8)
    n = lambda k, shape: (0.02 * jax.random.normal(
        k, shape, dtype=jnp.float32)).astype(jnp.bfloat16)   # bf16 weights
    wq = n(ks[0], (hidden, hidden))
    wk = n(ks[1], (hidden, hidden))
    wv = n(ks[2], (hidden, hidden))
    return {
        'wqkv': jnp.concatenate([wq, wk, wv], axis=1),       # (H, 3H) bf16
        'bqkv': jnp.zeros((1, 3 * hidden), jnp.float32),
        'wo': n(ks[3], (hidden, hidden)),
        'bo': jnp.zeros((1, hidden), jnp.float32),
        'ln1g': jnp.ones((1, hidden), jnp.float32),
        'ln1b': jnp.zeros((1, hidden), jnp.float32),
        'wi': n(ks[4], (hidden, intermediate)),
        'bi': jnp.zeros((1, intermediate), jnp.float32),
        'wo2': n(ks[5], (intermediate, hidden)),
        'bo2': jnp.zeros((1, hidden), jnp.float32),
        'ln2g': jnp.ones((1, hidden), jnp.float32),
        'ln2b': jnp.zeros((1, hidden), jnp.float32),
    }


# Pure-JAX f32 reference (same bf16-stored weights) for a numerics check.
def _reference_forward(x, mask, head_mask, layer_params, *, num_heads):
    def ln(v, g, b):
        m = jnp.mean(v, -1, keepdims=True)
        var = jnp.mean(jnp.square(v - m), -1, keepdims=True)
        return (v - m) * lax.rsqrt(var + LAYER_NORM_EPS) * g + b

    B, S, H = x.shape
    DH = H // num_heads
    f = lambda a: a.astype(jnp.float32)
    h = x
    attns = []
    for i, p in enumerate(layer_params):
        h2d = h.reshape(B * S, H)
        qkv = (h2d @ f(p['wqkv']) + f(p['bqkv'])).reshape(B, S, 3, num_heads, DH)
        q, k, v = qkv[:, :, 0], qkv[:, :, 1], qkv[:, :, 2]
        s = jnp.einsum('bqhd,bkhd->bhqk', q, k) / math.sqrt(DH)
        s = s + mask[:, :, None, :]
        pa = jax.nn.softmax(s, axis=-1)
        pa = pa * head_mask[i].reshape(1, num_heads, 1, 1)
        attns.append(pa)
        ctx = jnp.einsum('bhqk,bkhd->bqhd', pa, v).reshape(B * S, H)
        h1 = ln(ctx @ f(p['wo']) + f(p['bo']) + h2d, f(p['ln1g']), f(p['ln1b']))
        inter = _gelu_erf(h1 @ f(p['wi']) + f(p['bi']))
        h = ln(inter @ f(p['wo2']) + f(p['bo2']) + h1,
               f(p['ln2g']), f(p['ln2b'])).reshape(B, S, H)
    return h, attns


if __name__ == "__main__":
    # Small config consistent with a BERT encoder stack.
    B, S, H, NH, I, L = 2, 8, 32, 4, 64, 2

    key = jax.random.PRNGKey(0)
    k_x, k_params = jax.random.split(key)

    hidden_states = jax.random.normal(k_x, (B, S, H), dtype=jnp.float32)
    # Additive "extended" attention mask: 0 = attend, -10000 = masked.
    attention_mask = jnp.zeros((B, 1, S), dtype=jnp.float32)
    # head_mask per layer (all ones == no head pruning).
    head_mask = [jnp.ones((1, NH), dtype=jnp.float32) for _ in range(L)]

    layer_keys = jax.random.split(k_params, L)
    layer_params = [init_layer_params(layer_keys[i], H, I) for i in range(L)]

    # Path 1: full module semantics (hidden states + attention probs).
    outputs = large_encoder_forward(
        hidden_states, attention_mask, head_mask, layer_params,
        num_heads=NH, output_hidden_states=True, output_attentions=True)
    final_hidden = jax.block_until_ready(outputs[0])
    for hs in outputs[1]:
        jax.block_until_ready(hs)
    for at in outputs[2]:
        jax.block_until_ready(at)

    assert final_hidden.shape == (B, S, H)
    assert len(outputs[1]) == L + 1
    assert len(outputs[2]) == L and outputs[2][0].shape == (B, NH, S, S)

    # Path 2: flash-attention path (no attention probs materialized).
    outputs_flash = large_encoder_forward(
        hidden_states, attention_mask, head_mask, layer_params,
        num_heads=NH, output_hidden_states=False, output_attentions=False)
    flash_hidden = jax.block_until_ready(outputs_flash[0])
    assert flash_hidden.shape == (B, S, H)

    # Numerics check vs pure-JAX f32 reference (loose: kernels use bf16 MXU).
    ref_hidden, ref_attns = _reference_forward(
        hidden_states, attention_mask, head_mask, layer_params, num_heads=NH)
    err_h = float(jnp.max(jnp.abs(final_hidden.astype(jnp.float32) - ref_hidden)))
    err_f = float(jnp.max(jnp.abs(flash_hidden.astype(jnp.float32) - ref_hidden)))
    err_a = max(float(jnp.max(jnp.abs(outputs[2][i].astype(jnp.float32)
                                      - ref_attns[i])))
                for i in range(L))
    assert err_h < 0.2, f"hidden mismatch: {err_h}"
    assert err_f < 0.2, f"flash hidden mismatch: {err_f}"
    assert err_a < 0.05, f"attention prob mismatch: {err_a}"

    print("KERNEL_OK")
</pallas_src>

<mosaic_0001>
module attributes {stable_mosaic.version = 11 : i64} {
  func.func @_linear_kernel(%arg0: i32, %arg1: i32, %arg2: memref<16x32xbf16, #tpu.memory_space<vmem>>, %arg3: memref<32x96xbf16, #tpu.memory_space<vmem>>, %arg4: memref<1x96xf32, #tpu.memory_space<vmem>>, %arg5: memref<16x96xbf16, #tpu.memory_space<vmem>>) attributes {dimension_semantics = [#tpu.dimension_semantics<parallel>, #tpu.dimension_semantics<parallel>], iteration_bounds = array<i64: 1, 1>, scalar_prefetch = 0 : i64, scratch_operands = 0 : i64, tpu.core_type = #tpu.core_type<tc>, window_params = [{transform_indices = @transform_0, window_bounds = array<i64: 16, 32>}, {transform_indices = @transform_1, window_bounds = array<i64: 32, 96>}, {transform_indices = @transform_2, window_bounds = array<i64: 1, 96>}, {transform_indices = @transform_3, window_bounds = array<i64: 16, 96>}]} {
    %c0 = arith.constant 0 : index
    %c0_0 = arith.constant 0 : index
    %0 = vector.load %arg2[%c0, %c0_0] : memref<16x32xbf16, #tpu.memory_space<vmem>>, vector<16x32xbf16>
    %c0_1 = arith.constant 0 : index
    %c0_2 = arith.constant 0 : index
    %1 = vector.load %arg3[%c0_1, %c0_2] : memref<32x96xbf16, #tpu.memory_space<vmem>>, vector<32x96xbf16>
    %cst = arith.constant dense<0.000000e+00> : vector<16x96xf32>
    %2 = tpu.matmul %0, %1, %cst {dimension_numbers = #tpu.dot_dimension_numbers<[1], [0], [0], [1], [0, 0, 1, 1], [], []>} : vector<16x32xbf16>, vector<32x96xbf16>, vector<16x96xf32> -> vector<16x96xf32>
    %c0_3 = arith.constant 0 : index
    %c0_4 = arith.constant 0 : index
    %3 = vector.load %arg4[%c0_3, %c0_4] : memref<1x96xf32, #tpu.memory_space<vmem>>, vector<1x96xf32>
    %4 = vector.broadcast %3 : vector<1x96xf32> to vector<16x96xf32>
    %5 = arith.addf %2, %4 : vector<16x96xf32>
    %6 = arith.truncf %5 : vector<16x96xf32> to vector<16x96xbf16>
    %c0_5 = arith.constant 0 : index
    %c0_6 = arith.constant 0 : index
    %7 = vector.load %arg5[%c0_5, %c0_6] : memref<16x96xbf16, #tpu.memory_space<vmem>>, vector<16x96xbf16>
    tpu.vector_store %arg5[%c0_5, %c0_6], %6 {strides = array<i32>} : memref<16x96xbf16, #tpu.memory_space<vmem>>, vector<16x96xbf16>,
    return
  }
  func.func @transform_0(%arg0: i32, %arg1: i32) -> (i32, i32) {
    %c0_i32 = arith.constant 0 : i32
    %c0_i32_0 = arith.constant 0 : i32
    return %arg1, %c0_i32 : i32, i32
  }
  func.func @transform_1(%arg0: i32, %arg1: i32) -> (i32, i32) {
    %c0_i32 = arith.constant 0 : i32
    %c0_i32_0 = arith.constant 0 : i32
    return %c0_i32, %arg0 : i32, i32
  }
  func.func @transform_2(%arg0: i32, %arg1: i32) -> (i32, i32) {
    %c0_i32 = arith.constant 0 : i32
    %c0_i32_0 = arith.constant 0 : i32
    return %c0_i32, %arg0 : i32, i32
  }
  func.func @transform_3(%arg0: i32, %arg1: i32) -> (i32, i32) {
    %c0_i32 = arith.constant 0 : i32
    return %arg1, %arg0 : i32, i32
  }
}

</mosaic_0001>

<llo_original>
// kernel: tpu_custom_call.1
$region0: #{tpu_custom_call.1}
  #allocation0 [shape = 'u32[]', space=smem, size = 0x4, offset = 0x4, fixed_abs, tag = 'smem constant byte address 0x4 - core index']
  #allocation1 [shape = 'u32[144,128]{1,0:T(1,128)}', space=vmem, size = 0x12000, scoped, tag = 'internal scratch']
  %s0 = inlined_call_operand.hbm [shape: bf16[16,32], index: 0, kind: input, shape index: {}]
  %s1 = inlined_call_operand.hbm [shape: bf16[32,96], index: 1, kind: input, shape index: {}]
  %s2 = inlined_call_operand.vmem [shape: f32[1,96], index: 2, kind: input, shape index: {}]
  %s3 = inlined_call_operand.hbm [shape: bf16[16,96], index: 3, kind: output, shape index: {}]
  %s4 = sld [smem:[#allocation0]]
  $region30: #{tpu_custom_call.1} parent=0
    _
  %s6 = ssub.s32 1, %s4
  %s7 = scalar_select 0, %s6, %s4
  $region1: #{tpu_custom_call.1} parent=0
    #allocation2 [shape = 'u8[4096]{0}', space=vmem, size = 0x1000, scoped, tag = 'input window, operand 0, single buffered']
    #allocation3 [shape = 's32[1]{0}', space=sflag, size = 0x4, scoped, tag = 'scoped memory for tpu_custom_call.1']
    #allocation4 [shape = 's32[1]{0}', space=sflag, size = 0x4, scoped, tag = 'scoped memory for tpu_custom_call.1']
    #allocation5 [shape = 'u8[8192]{0}', space=vmem, size = 0x2000, scoped, tag = 'input window, operand 1, single buffered']
    #allocation6 [shape = 's32[1]{0}', space=sflag, size = 0x4, scoped, tag = 'scoped memory for tpu_custom_call.1']
    #allocation7 [shape = 'u8[4096]{0}', space=vmem, size = 0x1000, scoped, tag = 'output window, operand 0, single buffered']
    %8 = vsyncpa [#allocation3], 0
    %9 = vsyncpa [#allocation6], 0
    %10 = vsyncpa [#allocation4], 0
    // Predicated region
    $region2: #{tpu_custom_call.1} parent=1 // pred_check
      _
    $region3: #{tpu_custom_call.1} parent=1 // pred_check_branch
      %12 = sbr.rel (0) target = $region5
    $region4: #{tpu_custom_call.1} parent=1 // pred_region
      %s14 = ssub.s32 128, 128
      %15 = vsyncadd [#allocation3], %s14
      %s16 = sshll.u32 [#allocation2], 4
      %s17 = int_to_ptr.vmem [resolvable:$true] %s16
      %22 = dma.hbm_to_vmem [thread:$0]  %s0, 128, %s17, [#allocation3], 64, 64, 4
    $region5: #{tpu_custom_call.1} parent=1 // pred_fallthru
      _
    // Predicated region
    $region6: #{tpu_custom_call.1} parent=1 // pred_check
      _
    $region7: #{tpu_custom_call.1} parent=1 // pred_check_branch
      %24 = sbr.rel (0) target = $region9
    $region8: #{tpu_custom_call.1} parent=1 // pred_region
      %s26 = ssub.s32 256, 256
      %27 = vsyncadd [#allocation6], %s26
      %s28 = sshll.u32 [#allocation5], 4
      %s29 = int_to_ptr.vmem [resolvable:$true] %s28
      %34 = dma.hbm_to_vmem [thread:$0]  %s1, 256, %s29, [#allocation6], 64, 64, 4
    $region9: #{tpu_custom_call.1} parent=1 // pred_fallthru
      _
    // Predicated region
    $region10: #{tpu_custom_call.1} parent=1 // pred_check
      _
    $region11: #{tpu_custom_call.1} parent=1 // pred_check_branch
      %36 = sbr.rel (0) target = $region13
    $region12: #{tpu_custom_call.1} parent=1 // pred_region
      _
    $region13: #{tpu_custom_call.1} parent=1 // pred_fallthru
      _
    // Predicated region
    $region14: #{tpu_custom_call.1} parent=1 // pred_check
      _
    $region15: #{tpu_custom_call.1} parent=1 // pred_check_branch
      %38 = sbr.rel (0) target = $region17
    $region16: #{tpu_custom_call.1} parent=1 // pred_region
      %39 = dma.done [#allocation3], 128
    $region17: #{tpu_custom_call.1} parent=1 // pred_fallthru
      _
    // Predicated region
    $region18: #{tpu_custom_call.1} parent=1 // pred_check
      _
    $region19: #{tpu_custom_call.1} parent=1 // pred_check_branch
      %41 = sbr.rel (0) target = $region21
    $region20: #{tpu_custom_call.1} parent=1 // pred_region
      %42 = dma.done [#allocation6], 256
    $region21: #{tpu_custom_call.1} parent=1 // pred_fallthru
      _
    %v44 = vld [vmem:[#allocation2] sm:$0xf]
    %v45 = vld [vmem:[#allocation2 + $0x4] sm:$0xf]
    %v46 = vld [vmem:[#allocation5] sm:$0xf]
    %v47 = vld [vmem:[#allocation5 + $0x4] sm:$0xf]
    %v48 = vld [vmem:[#allocation5 + $0x8] sm:$0xf]
    %v49 = vld [vmem:[#allocation5 + $0xc] sm:$0xf]
    %v50 = vld [vmem:[%s2] sm:$0x1]
    %v52 = vlaneseq
    %v53 = vshrl.u32 %v52, 7
    %v54 = vsub.s32 0, %v53
    %v55 = vrot.slane %v50, %v54
    %v59 = vunpack.c.l.b16 %v44
    %v60 = vunpack.c.l.b16 %v45
    %v61 = vpack.c.b16 %v60, %v59
    %v66 = vunpack.c.l.b16 %v46
    %v67 = vunpack.c.l.b16 %v47
    %v68 = vunpack.c.l.b16 %v48
    %v69 = vunpack.c.l.b16 %v49
    %v70 = vpack.c.b16 %v67, %v66
    %v71 = vpack.c.b16 %v69, %v68
    %vm74 = vcmask 261120
    %v76 = vsel %vm74, %v61, 0
    %78 = vmatprep.subr.bf16.mxu0 0
    %79 = vmatpush1.bf16.msra.mxu0 %v70
    %80 = vmatprep.subr.bf16.mxu0 0
    %81 = vmatpush1.bf16.msra.mxu0 %v71
    %82 = vmatprep.subr.bf16.mxu0 0
    %83 = vmatpush1.bf16.msra.mxu0 0
    %84 = vmatprep.subr.bf16.mxu0 0
    %85 = vmatpush1.bf16.msra.mxu0 0
    %86 = vmatprep.subr.bf16.mxu0 0
    %87 = vmatpush1.bf16.msra.mxu0 0
    %88 = vmatprep.subr.bf16.mxu0 0
    %89 = vmatpush1.bf16.msra.mxu0 0
    %90 = vmatprep.subr.bf16.mxu0 0
    %91 = vmatpush1.bf16.msra.mxu0 0
    %92 = vmatprep.subr.bf16.mxu0 0
    %93 = vmatpush1.bf16.msra.mxu0 0
    %94 = vmatprep.subr.bf16.mxu0 0
    %95 = vmatpush1.bf16.msra.mxu0 0
    %96 = vmatprep.subr.bf16.mxu0 0
    %97 = vmatpush1.bf16.msra.mxu0 0
    %98 = vmatprep.subr.bf16.mxu0 0
    %99 = vmatpush1.bf16.msra.mxu0 0
    %100 = vmatprep.subr.bf16.mxu0 0
    %101 = vmatpush1.bf16.msra.mxu0 0
    %102 = vmatprep.subr.bf16.mxu0 0
    %103 = vmatpush1.bf16.msra.mxu0 0
    %104 = vmatprep.subr.bf16.mxu0 0
    %105 = vmatpush1.bf16.msra.mxu0 0
    %106 = vmatprep.subr.bf16.mxu0 0
    %107 = vmatpush1.bf16.msra.mxu0 0
    %108 = vmatprep.subr.bf16.mxu0 0
    %109 = vmatpush1.bf16.msra.mxu0 0
    %110 = vmatprep.mubr.bf16.mxu0 0
    %111 = vmatmul.mubr.bf16.gmra.mrb[0].mxu0 %v76
    %v112 = vpop.f32.mrb[0].mxu0
    %v113 = vadd.f32 %v55, %v112
    %v114 = vpop.f32.mrb[0].mxu0
    %v115 = vpop.f32.mrb[0].mxu0
    %v116 = vadd.f32 %v55, %v115
    %v117 = vpop.f32.mrb[0].mxu0
    %118 = vdwg.mxu0
    %v119 = vpack.c.bf16 %v116, %v113
    %v121 = vunpack.c.l.b16 %v119
    %v122 = vunpack.c.h.b16 %v119
    %v123 = vpack.c.b16 %v121, %v121
    %v124 = vpack.c.b16 %v122, %v122
    %vm127 = vcmask 781312
    %128 = vst.msk [vmem:[#allocation7] sm:$0xf] %vm127, %v123
    %129 = vst.msk [vmem:[#allocation7 + $0x4] sm:$0xf] %vm127, %v124
    // Predicated region
    $region22: #{tpu_custom_call.1} parent=1 // pred_check
      _
    $region23: #{tpu_custom_call.1} parent=1 // pred_check_branch
      %131 = sbr.rel (0) target = $region25
    $region24: #{tpu_custom_call.1} parent=1 // pred_region
      %s133 = ssub.s32 128, 128
      %134 = vsyncadd [#allocation4], %s133
      %s135 = sshll.u32 [#allocation7], 4
      %s136 = int_to_ptr.vmem [resolvable:$true] %s135
      %141 = dma.vmem_to_hbm [thread:$0]  %s136, 128, %s3, [#allocation4], 64, 64, 4
    $region25: #{tpu_custom_call.1} parent=1 // pred_fallthru
      _
    // Predicated region
    $region26: #{tpu_custom_call.1} parent=1 // pred_check
      _
    $region27: #{tpu_custom_call.1} parent=1 // pred_check_branch
      %143 = sbr.rel (0) target = $region29
    $region28: #{tpu_custom_call.1} parent=1 // pred_region
      %144 = dma.done [#allocation4], 128
    $region29: #{tpu_custom_call.1} parent=1 // pred_fallthru
      _
    %145 = vsyncpa [#allocation3], 1
    %146 = vsyncpa [#allocation6], 1
    %147 = vsyncpa [#allocation4], 1

</llo_original>
